<compile_context>
chip_gen: v5e
topology: v5e:2x2
jax: 0.10.0
libtpu: 0.0.40
codegen_flags: <defaults>
</compile_context>

<pallas_src>
import functools

import jax
import jax.numpy as jnp
import numpy as np
from jax.experimental import pallas as pl
from jax.experimental.pallas import tpu as pltpu


def _round_up(x, m):
    return ((x + m - 1) // m) * m


@functools.lru_cache(maxsize=1)
def _chip_params():
    """Per-generation tiling knobs: (n_cores, vmem_limit_bytes, tile_byte_budget).

    v7x: 64 MiB physical VMEM/core but 2 TensorCores -> keep the 2-wide
    'parallel' grid axis, conservative scoped limit.  v5e/v6e: 1 TensorCore,
    128 MiB VMEM -> single-core grid, larger tiles.  Conservative fallbacks if
    the queries fail (e.g. interpret mode)."""
    vmem_cap = 128 << 20
    try:
        vmem_cap = int(pltpu.get_tpu_info().vmem_capacity_bytes)
    except Exception:
        pass
    n_cores = 1
    try:
        kind = jax.devices()[0].device_kind.lower()
        if "v7" in kind or "7x" in kind:
            n_cores = 2
    except Exception:
        pass
    vmem_limit = int(min(vmem_cap // 2, 96 << 20))   # 64 MiB on v5e/v6e, 32 MiB on v7x
    tile_budget = vmem_limit // 2                    # Kernel A working-set target
    return n_cores, vmem_limit, tile_budget


def _padded_vmem_bytes(shape, dtype):
    """VMEM footprint of a whole-array block: last two dims pad to (8, 128)."""
    shape = tuple(int(s) for s in shape)
    if len(shape) == 1:
        shape = (1,) + shape
    lead = int(np.prod(shape[:-2])) if len(shape) > 2 else 1
    s2, s1 = shape[-2], shape[-1]
    return lead * _round_up(s2, 8) * _round_up(s1, 128) * np.dtype(dtype).itemsize


# ----------------------------------------------------------------------------
# Kernel A: row-tiled masked sum (big frame-level tensors)
# ----------------------------------------------------------------------------
def _tiled_masked_sum_kernel(pred_ref, truth_ref, mask_ref, out_ref, acc_ref,
                             *, loss_type):
    step = pl.program_id(1)

    @pl.when(step == 0)
    def _init():
        acc_ref[...] = jnp.zeros_like(acc_ref)

    p = pred_ref[...].astype(jnp.float32)          # (tm, C)
    t = truth_ref[...].astype(jnp.float32)         # (tm, C)
    m = mask_ref[...]                              # (tm, 1) f32 -> lane broadcast
    d = p - t
    e = d * d if loss_type == "mse" else jnp.abs(d)
    # Lane-wide partial sums: per step only vreg-row (VPU) accumulation into a
    # (1, C) accumulator - no per-step cross-lane reduce, no scalar serial chain,
    # and better f32 accumulation accuracy across many steps.
    acc_ref[...] += jnp.sum(e * m, axis=0, keepdims=True)     # (1, C)

    @pl.when(step == pl.num_programs(1) - 1)
    def _write():
        out_ref[0] = jnp.sum(acc_ref[...], keepdims=True)     # (1, 1)


def masked_sum_tiled(pred, truth, mask_valid, loss_type, max_rows_per_tile=None):
    """sum over mask-selected elements of (pred-truth)^2 or |pred-truth|.

    pred/truth: [B, T] or [B, T, C] in their native dtype (cast to f32 in-kernel).
    mask_valid: [B, T] bool, True = keep (broadcast over C, matching torch
    masked_select with mask.unsqueeze(-1)).  Returns the scalar f32 sum; the
    caller divides by the shared element count."""
    pred = jnp.asarray(pred)
    truth = jnp.asarray(truth)
    if pred.ndim == 2:
        pred = pred[..., None]
        truth = truth[..., None]
    B, T, C = pred.shape
    R = B * T
    p2 = pred.reshape(R, C)
    t2 = truth.reshape(R, C)
    m2 = jnp.asarray(mask_valid).reshape(R, 1).astype(jnp.float32)

    n_cores, vmem_limit, tile_budget = _chip_params()

    # Row-tile sizing from the real lane-padded VMEM footprint: pred/truth DMA
    # buffers pad C up to 128 lanes; mask column pads to 128 lanes; leave
    # headroom for in-kernel f32 temporaries.  Cap at 8192 rows per tile.
    itemsize = max(p2.dtype.itemsize, t2.dtype.itemsize)
    pad_c = _round_up(C, 128)
    bytes_per_row = (2 * 2 * pad_c * itemsize     # 2 inputs x 2 pipeline buffers
                     + 2 * 128 * 4                # f32 mask column x 2 buffers
                     + 3 * pad_c * 4)             # headroom for f32 temporaries
    tm = tile_budget // bytes_per_row
    tm = max(8, min(8192, tm))
    if max_rows_per_tile is not None:
        tm = max(8, min(tm, int(max_rows_per_tile)))
    tm = (tm // 8) * 8
    tm = min(tm, _round_up(R, 8))

    chunk = n_cores * tm
    r_pad = _round_up(R, chunk)
    if r_pad != R:                                # padded rows carry zero mask
        p2 = jnp.pad(p2, ((0, r_pad - R), (0, 0)))
        t2 = jnp.pad(t2, ((0, r_pad - R), (0, 0)))
        m2 = jnp.pad(m2, ((0, r_pad - R), (0, 0)))
    steps = r_pad // chunk

    data_map = lambda c, i: (c * steps + i, 0)
    partial = pl.pallas_call(
        functools.partial(_tiled_masked_sum_kernel, loss_type=loss_type),
        out_shape=jax.ShapeDtypeStruct((n_cores, 1, 1), jnp.float32),
        grid=(n_cores, steps),
        in_specs=[
            pl.BlockSpec((tm, C), data_map),
            pl.BlockSpec((tm, C), data_map),
            pl.BlockSpec((tm, 1), data_map),
        ],
        out_specs=pl.BlockSpec((1, 1, 1), lambda c, i: (c, 0, 0)),
        scratch_shapes=[pltpu.VMEM((1, C), jnp.float32)],
        compiler_params=pltpu.CompilerParams(
            dimension_semantics=("parallel", "arbitrary"),
            vmem_limit_bytes=vmem_limit,
        ),
    )(p2, t2, m2)
    return jnp.sum(partial)


# ----------------------------------------------------------------------------
# Kernel B: one launch for all phone-level (src_mask) terms
# ----------------------------------------------------------------------------
def _fused_masked_sums_kernel(*refs, term_specs):
    """refs = [mask_lane(B,S), pred_0, truth_0, ..., out_0(1,1), ..., out_{n-1}]"""
    n = len(term_specs)
    m_lane = refs[0][...]                          # (B, S) f32, lane-dense
    data_refs = refs[1: 1 + 2 * n]
    out_refs = refs[1 + 2 * n:]

    for k, (loss_type, log_truth, is_3d) in enumerate(term_specs):
        p = data_refs[2 * k][...].astype(jnp.float32)
        t = data_refs[2 * k + 1][...].astype(jnp.float32)
        if log_truth:                              # duration: log(d + 1)
            t = jnp.log(t + 1.0)
        d = p - t
        e = d * d if loss_type == "mse" else jnp.abs(d)
        if is_3d:
            # Lane-reduce over channels first, then one mask multiply on (B, S):
            # no padded [B*S,1] mask column, fewer VALU multiplies.
            e = jnp.sum(e, axis=-1)                # (B, S)
        out_refs[k][...] = jnp.sum(e * m_lane, keepdims=True)   # (1, 1)


def fused_masked_sums(mask_valid, terms):
    """terms: list of (pred, truth, loss_type, log_truth) sharing mask_valid [B,S].

    2-D preds are [B, S]; 3-D preds are [B, S, C] (mask broadcast over C).
    Returns a list of scalar f32 sums (one per term)."""
    # TODO(synk): if the fused phone-level data grows large on v7x, add a 2-wide
    # leading 'parallel' grid axis so both TensorCores are used.
    mask_valid = jnp.asarray(mask_valid)
    mask_lane = mask_valid.astype(jnp.float32)
    _, vmem_limit, _ = _chip_params()

    args = [mask_lane]
    specs = []
    for pred, truth, loss_type, log_truth in terms:
        pred = jnp.asarray(pred)
        truth = jnp.asarray(truth)
        specs.append((loss_type, bool(log_truth), pred.ndim == 3))
        args.extend([pred, truth])

    n = len(terms)
    outs = pl.pallas_call(
        functools.partial(_fused_masked_sums_kernel, term_specs=tuple(specs)),
        out_shape=tuple(jax.ShapeDtypeStruct((1, 1), jnp.float32) for _ in range(n)),
        in_specs=[pl.BlockSpec(memory_space=pltpu.MemorySpace.VMEM)] * len(args),
        out_specs=tuple(pl.BlockSpec(memory_space=pltpu.MemorySpace.VMEM)
                        for _ in range(n)),
        compiler_params=pltpu.CompilerParams(vmem_limit_bytes=vmem_limit),
    )(*args)
    return [o[0, 0] for o in outs]


# ----------------------------------------------------------------------------
# Glue: FastSpeech2Loss.forward
# ----------------------------------------------------------------------------
_DEFAULT_ALPHAS = {"mel": 1.0, "pitch": 0.1, "energy": 0.1, "snr": 0.1,
                   "duration": 0.0001, "fastdiff": 0.1, "speakers": 1}


def fastspeech2_loss(result, target,
                     variances=("energy", "pitch", "snr"),
                     variance_levels=("phone", "phone", "phone"),
                     variance_transforms=("cwt", "none", "none"),
                     variance_losses=("mse", "mse", "mse"),
                     mel_loss="l1", duration_loss="mse",
                     duration_stochastic=False,
                     max_length=4096, loss_alphas=None, frozen_components=()):
    if mel_loss not in ("mse", "l1"):
        raise NotImplementedError(f"mel_loss '{mel_loss}' not supported")
    alphas = dict(_DEFAULT_ALPHAS if loss_alphas is None else loss_alphas)
    for v, tr in zip(variances, variance_transforms):
        if tr == "cwt":
            alphas[v + "_cwt"] = alphas[v]
            alphas[v + "_mean"] = alphas[v]
            alphas[v + "_std"] = alphas[v]

    _, vmem_limit, _ = _chip_params()
    fuse_limit_bytes = vmem_limit // 4        # Kernel B resident-VMEM budget

    src_valid = jnp.logical_not(result["src_mask"])   # True = valid phone
    tgt_valid = jnp.logical_not(result["tgt_mask"])   # True = valid frame
    # Element counts computed once and shared by every masked term.
    # (All-padded batch -> division by zero -> NaN; matches torch masked_select().mean().)
    n_src = jnp.sum(src_valid.astype(jnp.float32))
    n_tgt = jnp.sum(tgt_valid.astype(jnp.float32))

    losses = {}
    phone_terms = []   # (name, pred, truth, loss_type, log_truth, n_channels)
    fused_bytes = _padded_vmem_bytes(src_valid.shape, jnp.float32)

    for var, level, transform, lss in zip(variances, variance_levels,
                                          variance_transforms, variance_losses):
        if lss not in ("mse", "l1"):
            # TODO(synk): soft_dtw variance loss has no Pallas equivalent here.
            raise NotImplementedError(f"variance loss '{lss}' not supported")
        if transform == "cwt":
            pred_spec = jnp.asarray(result[f"variances_{var}"]["spectrogram"])
            tgt_spec = jnp.asarray(target[f"variances_{var}_spectrogram"])
            n_ch = pred_spec.shape[-1]
            term_bytes = (_padded_vmem_bytes(pred_spec.shape, pred_spec.dtype)
                          + _padded_vmem_bytes(tgt_spec.shape, tgt_spec.dtype))
            if level == "phone" and fused_bytes + term_bytes <= fuse_limit_bytes:
                fused_bytes += term_bytes
                phone_terms.append((var + "_cwt", pred_spec, tgt_spec, lss, False, n_ch))
            else:
                mask = src_valid if level == "phone" else tgt_valid
                cnt = n_src if level == "phone" else n_tgt
                losses[var + "_cwt"] = masked_sum_tiled(pred_spec, tgt_spec, mask, lss) / (cnt * n_ch)
            # [B]-sized cwt statistics: plain JAX (a kernel launch would be pure overhead).
            p_mean = jnp.asarray(result[f"variances_{var}"]["mean"], jnp.float32)
            t_mean = jnp.asarray(target[f"variances_{var}_mean"], jnp.float32)
            p_std = jnp.asarray(result[f"variances_{var}"]["std"], jnp.float32)
            t_std = jnp.asarray(target[f"variances_{var}_std"], jnp.float32)
            losses[var + "_mean"] = jnp.mean((p_mean - t_mean) ** 2)
            losses[var + "_std"] = jnp.mean((p_std - t_std) ** 2)
        else:
            pred_v = jnp.asarray(result[f"variances_{var}"])
            tgt_v = jnp.asarray(target[f"variances_{var}"])
            if level == "frame":
                # TODO(synk): like torch, only the target is truncated to max_length;
                # pred/mask are assumed to already match.  Frame-level variances could
                # also be fused with the mel reduction into one tiled launch.
                tgt_v = tgt_v[:, :max_length]
                n_ch = pred_v.shape[-1] if pred_v.ndim == 3 else 1
                losses[var] = masked_sum_tiled(pred_v, tgt_v, tgt_valid, lss) / (n_tgt * n_ch)
            else:
                phone_terms.append((var, pred_v, tgt_v, lss, False, 1))

    # Duration (phone level); log(d + 1) target transform is folded into the kernel.
    if duration_stochastic:
        # TODO(synk): stochastic-duration flow loss not implemented; torch uses sum().
        losses["duration"] = jnp.sum(jnp.asarray(result["duration_prediction"]))
    else:
        if duration_loss not in ("mse", "l1"):
            raise NotImplementedError(f"duration loss '{duration_loss}' not supported")
        phone_terms.append(("duration", jnp.asarray(result["duration_prediction"]),
                            jnp.asarray(target["duration"]), duration_loss, True, 1))

    if phone_terms:
        sums = fused_masked_sums(
            src_valid, [(p, t, lt, lg) for (_, p, t, lt, lg, _) in phone_terms])
        for (name, _, _, _, _, n_ch), s in zip(phone_terms, sums):
            losses[name] = s / (n_src * n_ch)

    # Mel: largest tensor -> tiled, streamed masked reduction.
    mel_pred = jnp.asarray(result["mel"])
    losses["mel"] = masked_sum_tiled(mel_pred, target["mel"], tgt_valid, mel_loss) \
        / (n_tgt * mel_pred.shape[-1])

    # TODO(synk): fastdiff / speaker / soft_dtw branches are disabled in the default
    # configuration and are not implemented.

    total = sum(v * alphas[k] for k, v in losses.items()
                if not any(f in k for f in frozen_components))
    losses["total"] = total
    return losses


# ----------------------------------------------------------------------------
# Self-test
# ----------------------------------------------------------------------------
def _ref_masked(pred, truth, mask, loss_type):
    pred = jnp.asarray(pred, jnp.float32)
    truth = jnp.asarray(truth, jnp.float32)
    m = mask[..., None] if pred.ndim == 3 else mask
    m = jnp.broadcast_to(m, pred.shape).astype(jnp.float32)
    d = pred - truth
    e = d * d if loss_type == "mse" else jnp.abs(d)
    return jnp.sum(e * m) / jnp.sum(m)


if __name__ == "__main__":
    key = jax.random.PRNGKey(0)
    B, S, T, n_mel, n_cwt = 2, 8, 16, 20, 10
    ks = jax.random.split(key, 14)

    src_lens = jnp.array([8, 6])
    tgt_lens = jnp.array([16, 12])
    src_pad = jnp.arange(S)[None, :] >= src_lens[:, None]   # True = padded (torch convention)
    tgt_pad = jnp.arange(T)[None, :] >= tgt_lens[:, None]

    result = {
        "src_mask": src_pad,
        "tgt_mask": tgt_pad,
        "mel": jax.random.normal(ks[0], (B, T, n_mel), jnp.float32),
        "duration_prediction": jax.random.normal(ks[1], (B, S), jnp.float32),
        "variances_energy": {
            "spectrogram": jax.random.normal(ks[2], (B, S, n_cwt), jnp.float32),
            "mean": jax.random.normal(ks[3], (B,), jnp.float32),
            "std": jax.random.normal(ks[4], (B,), jnp.float32),
        },
        "variances_pitch": jax.random.normal(ks[5], (B, S), jnp.float32),
        "variances_snr": jax.random.normal(ks[6], (B, S), jnp.float32),
    }
    target = {
        "mel": jax.random.normal(ks[7], (B, T, n_mel), jnp.float32),
        "duration": jax.random.randint(ks[8], (B, S), 1, 5).astype(jnp.float32),
        "variances_energy_spectrogram": jax.random.normal(ks[9], (B, S, n_cwt), jnp.float32),
        "variances_energy_mean": jax.random.normal(ks[10], (B,), jnp.float32),
        "variances_energy_std": jax.random.normal(ks[11], (B,), jnp.float32),
        "variances_pitch": jax.random.normal(ks[12], (B, S), jnp.float32),
        "variances_snr": jax.random.normal(ks[13], (B, S), jnp.float32),
    }

    losses = fastspeech2_loss(result, target)
    jax.block_until_ready(losses["total"])

    # Correctness spot-checks against a pure-JAX reference of the torch semantics.
    valid_src = jnp.logical_not(src_pad)
    valid_tgt = jnp.logical_not(tgt_pad)
    checks = {
        "mel": _ref_masked(result["mel"], target["mel"], valid_tgt, "l1"),
        "energy_cwt": _ref_masked(result["variances_energy"]["spectrogram"],
                                  target["variances_energy_spectrogram"], valid_src, "mse"),
        "pitch": _ref_masked(result["variances_pitch"], target["variances_pitch"],
                             valid_src, "mse"),
        "snr": _ref_masked(result["variances_snr"], target["variances_snr"],
                           valid_src, "mse"),
        "duration": _ref_masked(result["duration_prediction"],
                                jnp.log(target["duration"] + 1.0), valid_src, "mse"),
        "energy_mean": jnp.mean((result["variances_energy"]["mean"]
                                 - target["variances_energy_mean"]) ** 2),
        "energy_std": jnp.mean((result["variances_energy"]["std"]
                                - target["variances_energy_std"]) ** 2),
    }
    for k, ref_v in checks.items():
        assert np.allclose(float(losses[k]), float(ref_v), rtol=1e-5, atol=1e-5), \
            f"mismatch in {k}: {float(losses[k])} vs {float(ref_v)}"
    assert np.isfinite(float(losses["total"]))

    # Exercise Kernel A's multi-step accumulate path (tiny forced tile -> several
    # grid steps with init / accumulate / epilogue).
    tiled_sum = masked_sum_tiled(result["mel"], target["mel"], valid_tgt, "l1",
                                 max_rows_per_tile=8)
    ref_sum = jnp.sum(jnp.abs(result["mel"] - target["mel"])
                      * valid_tgt[..., None].astype(jnp.float32))
    assert np.allclose(float(tiled_sum), float(ref_sum), rtol=1e-5, atol=1e-5), \
        f"multi-step tiled sum mismatch: {float(tiled_sum)} vs {float(ref_sum)}"

    print("KERNEL_OK")
</pallas_src>

<mosaic_0001>
module attributes {stable_mosaic.version = 11 : i64} {
  func.func @_fused_masked_sums_kernel(%arg0: memref<2x8xf32, #tpu.memory_space<vmem>>, %arg1: memref<2x8x10xf32, #tpu.memory_space<vmem>>, %arg2: memref<2x8x10xf32, #tpu.memory_space<vmem>>, %arg3: memref<2x8xf32, #tpu.memory_space<vmem>>, %arg4: memref<2x8xf32, #tpu.memory_space<vmem>>, %arg5: memref<2x8xf32, #tpu.memory_space<vmem>>, %arg6: memref<2x8xf32, #tpu.memory_space<vmem>>, %arg7: memref<2x8xf32, #tpu.memory_space<vmem>>, %arg8: memref<2x8xf32, #tpu.memory_space<vmem>>, %arg9: memref<1x1xf32, #tpu.memory_space<vmem>>, %arg10: memref<1x1xf32, #tpu.memory_space<vmem>>, %arg11: memref<1x1xf32, #tpu.memory_space<vmem>>, %arg12: memref<1x1xf32, #tpu.memory_space<vmem>>) attributes {dimension_semantics = [], scalar_prefetch = 0 : i64, scratch_operands = 0 : i64, tpu.core_type = #tpu.core_type<tc>} {
    %c0 = arith.constant 0 : index
    %c0_0 = arith.constant 0 : index
    %0 = vector.load %arg0[%c0, %c0_0] : memref<2x8xf32, #tpu.memory_space<vmem>>, vector<2x8xf32>
    %c0_1 = arith.constant 0 : index
    %c0_2 = arith.constant 0 : index
    %c0_3 = arith.constant 0 : index
    %1 = vector.load %arg1[%c0_1, %c0_2, %c0_3] : memref<2x8x10xf32, #tpu.memory_space<vmem>>, vector<2x8x10xf32>
    %c0_4 = arith.constant 0 : index
    %c0_5 = arith.constant 0 : index
    %c0_6 = arith.constant 0 : index
    %2 = vector.load %arg2[%c0_4, %c0_5, %c0_6] : memref<2x8x10xf32, #tpu.memory_space<vmem>>, vector<2x8x10xf32>
    %3 = arith.subf %1, %2 : vector<2x8x10xf32>
    %4 = arith.mulf %3, %3 : vector<2x8x10xf32>
    %cst = arith.constant dense<0.000000e+00> : vector<2x8xf32>
    %5 = vector.multi_reduction <add>, %4, %cst [2] : vector<2x8x10xf32> to vector<2x8xf32>
    %6 = arith.mulf %5, %0 : vector<2x8xf32>
    %7 = vector.shape_cast %6 : vector<2x8xf32> to vector<1x2x8xf32>
    %cst_7 = arith.constant dense<0.000000e+00> : vector<1xf32>
    %8 = vector.multi_reduction <add>, %7, %cst_7 [1, 2] : vector<1x2x8xf32> to vector<1xf32>
    %9 = vector.shape_cast %8 : vector<1xf32> to vector<1x1x1xf32>
    %10 = vector.extract %9[0, 0, 0] : f32 from vector<1x1x1xf32>
    %11 = vector.broadcast %10 : f32 to vector<1x1xf32>
    %c0_8 = arith.constant 0 : index
    %c0_9 = arith.constant 0 : index
    %12 = vector.load %arg9[%c0_8, %c0_9] : memref<1x1xf32, #tpu.memory_space<vmem>>, vector<1x1xf32>
    tpu.vector_store %arg9[%c0_8, %c0_9], %11 {strides = array<i32>} : memref<1x1xf32, #tpu.memory_space<vmem>>, vector<1x1xf32>,
    %c0_10 = arith.constant 0 : index
    %c0_11 = arith.constant 0 : index
    %13 = vector.load %arg3[%c0_10, %c0_11] : memref<2x8xf32, #tpu.memory_space<vmem>>, vector<2x8xf32>
    %c0_12 = arith.constant 0 : index
    %c0_13 = arith.constant 0 : index
    %14 = vector.load %arg4[%c0_12, %c0_13] : memref<2x8xf32, #tpu.memory_space<vmem>>, vector<2x8xf32>
    %15 = arith.subf %13, %14 : vector<2x8xf32>
    %16 = arith.mulf %15, %15 : vector<2x8xf32>
    %17 = arith.mulf %16, %0 : vector<2x8xf32>
    %18 = vector.shape_cast %17 : vector<2x8xf32> to vector<1x2x8xf32>
    %cst_14 = arith.constant dense<0.000000e+00> : vector<1xf32>
    %19 = vector.multi_reduction <add>, %18, %cst_14 [1, 2] : vector<1x2x8xf32> to vector<1xf32>
    %20 = vector.shape_cast %19 : vector<1xf32> to vector<1x1x1xf32>
    %21 = vector.extract %20[0, 0, 0] : f32 from vector<1x1x1xf32>
    %22 = vector.broadcast %21 : f32 to vector<1x1xf32>
    %c0_15 = arith.constant 0 : index
    %c0_16 = arith.constant 0 : index
    %23 = vector.load %arg10[%c0_15, %c0_16] : memref<1x1xf32, #tpu.memory_space<vmem>>, vector<1x1xf32>
    tpu.vector_store %arg10[%c0_15, %c0_16], %22 {strides = array<i32>} : memref<1x1xf32, #tpu.memory_space<vmem>>, vector<1x1xf32>,
    %c0_17 = arith.constant 0 : index
    %c0_18 = arith.constant 0 : index
    %24 = vector.load %arg5[%c0_17, %c0_18] : memref<2x8xf32, #tpu.memory_space<vmem>>, vector<2x8xf32>
    %c0_19 = arith.constant 0 : index
    %c0_20 = arith.constant 0 : index
    %25 = vector.load %arg6[%c0_19, %c0_20] : memref<2x8xf32, #tpu.memory_space<vmem>>, vector<2x8xf32>
    %26 = arith.subf %24, %25 : vector<2x8xf32>
    %27 = arith.mulf %26, %26 : vector<2x8xf32>
    %28 = arith.mulf %27, %0 : vector<2x8xf32>
    %29 = vector.shape_cast %28 : vector<2x8xf32> to vector<1x2x8xf32>
    %cst_21 = arith.constant dense<0.000000e+00> : vector<1xf32>
    %30 = vector.multi_reduction <add>, %29, %cst_21 [1, 2] : vector<1x2x8xf32> to vector<1xf32>
    %31 = vector.shape_cast %30 : vector<1xf32> to vector<1x1x1xf32>
    %32 = vector.extract %31[0, 0, 0] : f32 from vector<1x1x1xf32>
    %33 = vector.broadcast %32 : f32 to vector<1x1xf32>
    %c0_22 = arith.constant 0 : index
    %c0_23 = arith.constant 0 : index
    %34 = vector.load %arg11[%c0_22, %c0_23] : memref<1x1xf32, #tpu.memory_space<vmem>>, vector<1x1xf32>
    tpu.vector_store %arg11[%c0_22, %c0_23], %33 {strides = array<i32>} : memref<1x1xf32, #tpu.memory_space<vmem>>, vector<1x1xf32>,
    %c0_24 = arith.constant 0 : index
    %c0_25 = arith.constant 0 : index
    %35 = vector.load %arg7[%c0_24, %c0_25] : memref<2x8xf32, #tpu.memory_space<vmem>>, vector<2x8xf32>
    %c0_26 = arith.constant 0 : index
    %c0_27 = arith.constant 0 : index
    %36 = vector.load %arg8[%c0_26, %c0_27] : memref<2x8xf32, #tpu.memory_space<vmem>>, vector<2x8xf32>
    %cst_28 = arith.constant 1.000000e+00 : f32
    %37 = vector.broadcast %cst_28 : f32 to vector<2x8xf32>
    %38 = arith.addf %36, %37 : vector<2x8xf32>
    %39 = math.log %38 : vector<2x8xf32>
    %40 = arith.subf %35, %39 : vector<2x8xf32>
    %41 = arith.mulf %40, %40 : vector<2x8xf32>
    %42 = arith.mulf %41, %0 : vector<2x8xf32>
    %43 = vector.shape_cast %42 : vector<2x8xf32> to vector<1x2x8xf32>
    %cst_29 = arith.constant dense<0.000000e+00> : vector<1xf32>
    %44 = vector.multi_reduction <add>, %43, %cst_29 [1, 2] : vector<1x2x8xf32> to vector<1xf32>
    %45 = vector.shape_cast %44 : vector<1xf32> to vector<1x1x1xf32>
    %46 = vector.extract %45[0, 0, 0] : f32 from vector<1x1x1xf32>
    %47 = vector.broadcast %46 : f32 to vector<1x1xf32>
    %c0_30 = arith.constant 0 : index
    %c0_31 = arith.constant 0 : index
    %48 = vector.load %arg12[%c0_30, %c0_31] : memref<1x1xf32, #tpu.memory_space<vmem>>, vector<1x1xf32>
    tpu.vector_store %arg12[%c0_30, %c0_31], %47 {strides = array<i32>} : memref<1x1xf32, #tpu.memory_space<vmem>>, vector<1x1xf32>,
    return
  }
}

</mosaic_0001>

<llo_original>
// kernel: tpu_custom_call.1
$region0: #{tpu_custom_call.1}
  #allocation0 [shape = 'u32[]', space=smem, size = 0x4, offset = 0x4, fixed_abs, tag = 'smem constant byte address 0x4 - core index']
  #allocation1 [shape = 'u32[72,128]{1,0:T(1,128)}', space=vmem, size = 0x9000, scoped, tag = 'internal scratch']
  %s0 = inlined_call_operand.hbm [shape: f32[2,8], index: 0, kind: input, shape index: {}]
  %s1 = inlined_call_operand.hbm [shape: f32[2,8,10], index: 1, kind: input, shape index: {}]
  %s2 = inlined_call_operand.hbm [shape: f32[2,8,10], index: 2, kind: input, shape index: {}]
  %s3 = inlined_call_operand.vmem [shape: f32[2,8], index: 3, kind: input, shape index: {}]
  %s4 = inlined_call_operand.hbm [shape: f32[2,8], index: 4, kind: input, shape index: {}]
  %s5 = inlined_call_operand.vmem [shape: f32[2,8], index: 5, kind: input, shape index: {}]
  %s6 = inlined_call_operand.hbm [shape: f32[2,8], index: 6, kind: input, shape index: {}]
  %s7 = inlined_call_operand.vmem [shape: f32[2,8], index: 7, kind: input, shape index: {}]
  %s8 = inlined_call_operand.hbm [shape: f32[2,8], index: 8, kind: input, shape index: {}]
  %s9 = inlined_call_operand.hbm [shape: f32[1,1], index: 9, kind: output, shape index: {0}]
  %s10 = inlined_call_operand.hbm [shape: f32[1,1], index: 10, kind: output, shape index: {1}]
  %s11 = inlined_call_operand.hbm [shape: f32[1,1], index: 11, kind: output, shape index: {2}]
  %s12 = inlined_call_operand.hbm [shape: f32[1,1], index: 12, kind: output, shape index: {3}]
  %13 = xla_tuple %s9, %s10, %s11, %s12
  %s14 = sld [smem:[#allocation0]]
  $region94: #{tpu_custom_call.1} parent=0
    _
  %s16 = ssub.s32 1, %s14
  %s17 = scalar_select 0, %s16, %s14
  $region1: #{tpu_custom_call.1} parent=0
    #allocation2 [shape = 'u8[1024]{0}', space=vmem, size = 0x400, scoped, tag = 'input window, operand 0, single buffered']
    #allocation3 [shape = 's32[1]{0}', space=sflag, size = 0x4, scoped, tag = 'scoped memory for tpu_custom_call.1']
    #allocation4 [shape = 's32[1]{0}', space=sflag, size = 0x4, scoped, tag = 'scoped memory for tpu_custom_call.1']
    #allocation5 [shape = 'u8[8192]{0}', space=vmem, size = 0x2000, scoped, tag = 'input window, operand 1, single buffered']
    #allocation6 [shape = 's32[1]{0}', space=sflag, size = 0x4, scoped, tag = 'scoped memory for tpu_custom_call.1']
    #allocation7 [shape = 'u8[8192]{0}', space=vmem, size = 0x2000, scoped, tag = 'input window, operand 2, single buffered']
    #allocation8 [shape = 'u8[1024]{0}', space=vmem, size = 0x400, scoped, tag = 'input window, operand 4, single buffered']
    #allocation9 [shape = 's32[1]{0}', space=sflag, size = 0x4, scoped, tag = 'scoped memory for tpu_custom_call.1']
    #allocation10 [shape = 'u8[1024]{0}', space=vmem, size = 0x400, scoped, tag = 'input window, operand 6, single buffered']
    #allocation11 [shape = 'u8[1024]{0}', space=vmem, size = 0x400, scoped, tag = 'input window, operand 8, single buffered']
    #allocation12 [shape = 's32[1]{0}', space=sflag, size = 0x4, scoped, tag = 'scoped memory for tpu_custom_call.1']
    #allocation13 [shape = 'u8[512]{0}', space=vmem, size = 0x400, scoped, tag = 'output window, operand 0, single buffered']
    #allocation14 [shape = 'u8[512]{0}', space=vmem, size = 0x400, scoped, tag = 'output window, operand 1, single buffered']
    #allocation15 [shape = 's32[1]{0}', space=sflag, size = 0x4, scoped, tag = 'scoped memory for tpu_custom_call.1']
    #allocation16 [shape = 'u8[512]{0}', space=vmem, size = 0x400, scoped, tag = 'output window, operand 2, single buffered']
    #allocation17 [shape = 'u8[512]{0}', space=vmem, size = 0x400, scoped, tag = 'output window, operand 3, single buffered']
    #allocation18 [shape = 's32[1]{0}', space=sflag, size = 0x4, scoped, tag = 'scoped memory for tpu_custom_call.1']
    %18 = vsyncpa [#allocation3], 0
    %19 = vsyncpa [#allocation6], 0
    %20 = vsyncpa [#allocation9], 0
    %21 = vsyncpa [#allocation12], 0
    %22 = vsyncpa [#allocation4], 0
    %23 = vsyncpa [#allocation15], 0
    %24 = vsyncpa [#allocation18], 0
    // Predicated region
    $region2: #{tpu_custom_call.1} parent=1 // pred_check
      _
    $region3: #{tpu_custom_call.1} parent=1 // pred_check_branch
      %26 = sbr.rel (0) target = $region5
    $region4: #{tpu_custom_call.1} parent=1 // pred_region
      %28 = vsyncadd [#allocation3], 0
      %s30 = sshll.u32 %s0, 4
      %s31 = int_to_ptr.hbm [resolvable:$true] %s30
      %s32 = sshll.u32 [#allocation2], 4
      %s33 = int_to_ptr.vmem [resolvable:$true] %s32
      %35 = dma.hbm_to_vmem [thread:$0]  %s31, 32, %s33, [#allocation3]
    $region5: #{tpu_custom_call.1} parent=1 // pred_fallthru
      _
    // Predicated region
    $region6: #{tpu_custom_call.1} parent=1 // pred_check
      _
    $region7: #{tpu_custom_call.1} parent=1 // pred_check_branch
      %37 = sbr.rel (0) target = $region9
    $region8: #{tpu_custom_call.1} parent=1 // pred_region
      %39 = vsyncadd [#allocation6], 0
      %s40 = sshll.u32 %s1, 4
      %s41 = int_to_ptr.hbm [resolvable:$true] %s40
      %s42 = sshll.u32 [#allocation5], 4
      %s43 = int_to_ptr.vmem [resolvable:$true] %s42
      %48 = dma.hbm_to_vmem [thread:$0]  %s41, 256, %s43, [#allocation6], 128, 128, 8
    $region9: #{tpu_custom_call.1} parent=1 // pred_fallthru
      _
    // Predicated region
    $region10: #{tpu_custom_call.1} parent=1 // pred_check
      _
    $region11: #{tpu_custom_call.1} parent=1 // pred_check_branch
      %50 = sbr.rel (0) target = $region13
    $region12: #{tpu_custom_call.1} parent=1 // pred_region
      %52 = vsyncadd [#allocation6], 0
      %s53 = sshll.u32 %s2, 4
      %s54 = int_to_ptr.hbm [resolvable:$true] %s53
      %s55 = sshll.u32 [#allocation7], 4
      %s56 = int_to_ptr.vmem [resolvable:$true] %s55
      %61 = dma.hbm_to_vmem [thread:$0]  %s54, 256, %s56, [#allocation6], 128, 128, 8
    $region13: #{tpu_custom_call.1} parent=1 // pred_fallthru
      _
    // Predicated region
    $region14: #{tpu_custom_call.1} parent=1 // pred_check
      _
    $region15: #{tpu_custom_call.1} parent=1 // pred_check_branch
      %63 = sbr.rel (0) target = $region17
    $region16: #{tpu_custom_call.1} parent=1 // pred_region
      _
    $region17: #{tpu_custom_call.1} parent=1 // pred_fallthru
      _
    // Predicated region
    $region18: #{tpu_custom_call.1} parent=1 // pred_check
      _
    $region19: #{tpu_custom_call.1} parent=1 // pred_check_branch
      %65 = sbr.rel (0) target = $region21
    $region20: #{tpu_custom_call.1} parent=1 // pred_region
      %67 = vsyncadd [#allocation9], 0
      %s69 = sshll.u32 %s4, 4
      %s70 = int_to_ptr.hbm [resolvable:$true] %s69
      %s71 = sshll.u32 [#allocation8], 4
      %s72 = int_to_ptr.vmem [resolvable:$true] %s71
      %74 = dma.hbm_to_vmem [thread:$0]  %s70, 32, %s72, [#allocation9]
    $region21: #{tpu_custom_call.1} parent=1 // pred_fallthru
      _
    // Predicated region
    $region22: #{tpu_custom_call.1} parent=1 // pred_check
      _
    $region23: #{tpu_custom_call.1} parent=1 // pred_check_branch
      %76 = sbr.rel (0) target = $region25
    $region24: #{tpu_custom_call.1} parent=1 // pred_region
      _
    $region25: #{tpu_custom_call.1} parent=1 // pred_fallthru
      _
    // Predicated region
    $region26: #{tpu_custom_call.1} parent=1 // pred_check
      _
    $region27: #{tpu_custom_call.1} parent=1 // pred_check_branch
      %78 = sbr.rel (0) target = $region29
    $region28: #{tpu_custom_call.1} parent=1 // pred_region
      %80 = vsyncadd [#allocation9], 0
      %s82 = sshll.u32 %s6, 4
      %s83 = int_to_ptr.hbm [resolvable:$true] %s82
      %s84 = sshll.u32 [#allocation10], 4
      %s85 = int_to_ptr.vmem [resolvable:$true] %s84
      %87 = dma.hbm_to_vmem [thread:$0]  %s83, 32, %s85, [#allocation9]
    $region29: #{tpu_custom_call.1} parent=1 // pred_fallthru
      _
    // Predicated region
    $region30: #{tpu_custom_call.1} parent=1 // pred_check
      _
    $region31: #{tpu_custom_call.1} parent=1 // pred_check_branch
      %89 = sbr.rel (0) target = $region33
    $region32: #{tpu_custom_call.1} parent=1 // pred_region
      _
    $region33: #{tpu_custom_call.1} parent=1 // pred_fallthru
      _
    // Predicated region
    $region34: #{tpu_custom_call.1} parent=1 // pred_check
      _
    $region35: #{tpu_custom_call.1} parent=1 // pred_check_branch
      %91 = sbr.rel (0) target = $region37
    $region36: #{tpu_custom_call.1} parent=1 // pred_region
      %93 = vsyncadd [#allocation12], 0
      %s95 = sshll.u32 %s8, 4
      %s96 = int_to_ptr.hbm [resolvable:$true] %s95
      %s97 = sshll.u32 [#allocation11], 4
      %s98 = int_to_ptr.vmem [resolvable:$true] %s97
      %100 = dma.hbm_to_vmem [thread:$0]  %s96, 32, %s98, [#allocation12]
    $region37: #{tpu_custom_call.1} parent=1 // pred_fallthru
      _
    // Predicated region
    $region38: #{tpu_custom_call.1} parent=1 // pred_check
      _
    $region39: #{tpu_custom_call.1} parent=1 // pred_check_branch
      %102 = sbr.rel (0) target = $region41
    $region40: #{tpu_custom_call.1} parent=1 // pred_region
      %104 = dma.done [#allocation3], 32
    $region41: #{tpu_custom_call.1} parent=1 // pred_fallthru
      _
    // Predicated region
    $region42: #{tpu_custom_call.1} parent=1 // pred_check
      _
    $region43: #{tpu_custom_call.1} parent=1 // pred_check_branch
      %106 = sbr.rel (0) target = $region45
    $region44: #{tpu_custom_call.1} parent=1 // pred_region
      %108 = dma.done [#allocation6], 256
    $region45: #{tpu_custom_call.1} parent=1 // pred_fallthru
      _
    // Predicated region
    $region46: #{tpu_custom_call.1} parent=1 // pred_check
      _
    $region47: #{tpu_custom_call.1} parent=1 // pred_check_branch
      %110 = sbr.rel (0) target = $region49
    $region48: #{tpu_custom_call.1} parent=1 // pred_region
      %112 = dma.done [#allocation6], 256
    $region49: #{tpu_custom_call.1} parent=1 // pred_fallthru
      _
    // Predicated region
    $region50: #{tpu_custom_call.1} parent=1 // pred_check
      _
    $region51: #{tpu_custom_call.1} parent=1 // pred_check_branch
      %114 = sbr.rel (0) target = $region53
    $region52: #{tpu_custom_call.1} parent=1 // pred_region
      %116 = dma.done [#allocation9], 32
    $region53: #{tpu_custom_call.1} parent=1 // pred_fallthru
      _
    // Predicated region
    $region54: #{tpu_custom_call.1} parent=1 // pred_check
      _
    $region55: #{tpu_custom_call.1} parent=1 // pred_check_branch
      %118 = sbr.rel (0) target = $region57
    $region56: #{tpu_custom_call.1} parent=1 // pred_region
      %120 = dma.done [#allocation9], 32
    $region57: #{tpu_custom_call.1} parent=1 // pred_fallthru
      _
    // Predicated region
    $region58: #{tpu_custom_call.1} parent=1 // pred_check
      _
    $region59: #{tpu_custom_call.1} parent=1 // pred_check_branch
      %122 = sbr.rel (0) target = $region61
    $region60: #{tpu_custom_call.1} parent=1 // pred_region
      %124 = dma.done [#allocation12], 32
    $region61: #{tpu_custom_call.1} parent=1 // pred_fallthru
      _
    %v125 = vld [vmem:[#allocation2] sm:$0x3]
    %v126 = vld [vmem:[#allocation5] sm:$0xff]
    %v127 = vld [vmem:[#allocation5 + $0x8] sm:$0xff]
    %v128 = vld [vmem:[#allocation7] sm:$0xff]
    %v129 = vld [vmem:[#allocation7 + $0x8] sm:$0xff]
    %v130 = vsub.f32 %v126, %v128
    %v131 = vsub.f32 %v127, %v129
    %v132 = vmul.f32 %v130, %v130
    %v133 = vmul.f32 %v131, %v131
    %vm134 = vcmask 80896
    %v135 = vsel %vm134, %v132, 0.0
    %136 = vadd.xlane.f32.xlu0 %v135
    %v137 = vpop.xlane.xlu0 %136
    %v138 = vsel %vm134, %v133, 0.0
    %139 = vadd.xlane.f32.xlu0 %v138
    %v140 = vpop.xlane.xlu0 %139
    %v142 = vperm.slane %v125, 0
    %v143 = vlaneseq
    %v144 = vshrl.u32 %v143, 7
    %146 = vset.pattern.permute.xlu0 %v144
    %147 = vperm.xlu0 %146, %v142
    %v148 = vpop.permute.xlu0 %147
    %v149 = vperm.slane %v125, 1
    %v150 = vlaneseq
    %v151 = vshrl.u32 %v150, 7
    %153 = vset.pattern.permute.xlu0 %v151
    %154 = vperm.xlu0 %153, %v149
    %v155 = vpop.permute.xlu0 %154
    %v158 = vmul.f32 %v137, %v148
    %v159 = vmul.f32 %v140, %v155
    %162 = vset.pattern.permute.xlu0 0
    %163 = vperm.xlu0 %162, %v158
    %v164 = vpop.permute.xlu0 %163
    %165 = vset.pattern.permute.xlu0 0
    %166 = vperm.xlu0 %165, %v159
    %v167 = vpop.permute.xlu0 %166
    %v168 = vlaneseq
    %v169 = vand.u32 %v168, 127
    %v170 = vperm.slane %v164, %v169
    %v171 = vperm.slane %v167, %v169
    %vm172 = vcmask 1041409
    %v173 = vsel %vm172, %v171, %v170
    %vm175 = vcmask 58368
    %v176 = vsel %vm175, %v173, 0.0
    %177 = vadd.xlane.f32.xlu0 %v176
    %v178 = vpop.xlane.xlu0 %177
    %v179 = vrot.slane %v178, 4
    %v180 = vadd.f32 %v178, %v179
    %v181 = vrot.slane %v180, 2
    %v182 = vadd.f32 %v180, %v181
    %v183 = vrot.slane %v182, 1
    %v184 = vadd.f32 %v182, %v183
    %s185 = vtos %v184
    %v186 = vstv %s185
    %vm187 = vcmask 0
    %188 = vst.msk [vmem:[#allocation13] sm:$0x1] %vm187, %v186
    %v189 = vld [vmem:[%s3] sm:$0x3]
    %v190 = vld [vmem:[#allocation8] sm:$0x3]
    %v191 = vsub.f32 %v189, %v190
    %v192 = vmul.f32 %v191, %v191
    %v193 = vmul.f32 %v192, %v125
    %v194 = vsel %vm175, %v193, 0.0
    %195 = vadd.xlane.f32.xlu0 %v194
    %v196 = vpop.xlane.xlu0 %195
    %v197 = vrot.slane %v196, 4
    %v198 = vadd.f32 %v196, %v197
    %v199 = vrot.slane %v198, 2
    %v200 = vadd.f32 %v198, %v199
    %v201 = vrot.slane %v200, 1
    %v202 = vadd.f32 %v200, %v201
    %s203 = vtos %v202
    %v204 = vstv %s203
    %205 = vst.msk [vmem:[#allocation14] sm:$0x1] %vm187, %v204
    %v206 = vld [vmem:[%s5] sm:$0x3]
    %v207 = vld [vmem:[#allocation10] sm:$0x3]
    %v208 = vsub.f32 %v206, %v207
    %v209 = vmul.f32 %v208, %v208
    %v210 = vmul.f32 %v209, %v125
    %v211 = vsel %vm175, %v210, 0.0
    %212 = vadd.xlane.f32.xlu0 %v211
    %v213 = vpop.xlane.xlu0 %212
    %v214 = vrot.slane %v213, 4
    %v215 = vadd.f32 %v213, %v214
    %v216 = vrot.slane %v215, 2
    %v217 = vadd.f32 %v215, %v216
    %v218 = vrot.slane %v217, 1
    %v219 = vadd.f32 %v217, %v218
    %s220 = vtos %v219
    %v221 = vstv %s220
    %222 = vst.msk [vmem:[#allocation16] sm:$0x1] %vm187, %v221
    %v223 = vld [vmem:[%s7] sm:$0x3]
    %v224 = vld [vmem:[#allocation11] sm:$0x3]
    %v225 = vadd.f32 %v224, 1.0
    %v226 = vlog2.pop %v225
    %v227 = vmul.f32 %v226, 0.6931472
    %v228 = vsub.f32 %v223, %v227
    %v229 = vmul.f32 %v228, %v228
    %v230 = vmul.f32 %v229, %v125
    %v231 = vsel %vm175, %v230, 0.0
    %232 = vadd.xlane.f32.xlu0 %v231
    %v233 = vpop.xlane.xlu0 %232
    %v234 = vrot.slane %v233, 4
    %v235 = vadd.f32 %v233, %v234
    %v236 = vrot.slane %v235, 2
    %v237 = vadd.f32 %v235, %v236
    %v238 = vrot.slane %v237, 1
    %v239 = vadd.f32 %v237, %v238
    %s240 = vtos %v239
    %v241 = vstv %s240
    %242 = vst.msk [vmem:[#allocation17] sm:$0x1] %vm187, %v241
    // Predicated region
    $region62: #{tpu_custom_call.1} parent=1 // pred_check
      _
    $region63: #{tpu_custom_call.1} parent=1 // pred_check_branch
      %244 = sbr.rel (0) target = $region65
    $region64: #{tpu_custom_call.1} parent=1 // pred_region
      %246 = vsyncadd [#allocation4], 0
      %s248 = sshll.u32 [#allocation13], 4
      %s249 = int_to_ptr.vmem [resolvable:$true] %s248
      %s250 = sshll.u32 %s9, 4
      %s251 = int_to_ptr.hbm [resolvable:$true] %s250
      %253 = dma.vmem_to_hbm [thread:$0]  %s249, 16, %s251, [#allocation4]
    $region65: #{tpu_custom_call.1} parent=1 // pred_fallthru
      _
    // Predicated region
    $region66: #{tpu_custom_call.1} parent=1 // pred_check
      _
    $region67: #{tpu_custom_call.1} parent=1 // pred_check_branch
      %255 = sbr.rel (0) target = $region69
    $region68: #{tpu_custom_call.1} parent=1 // pred_region
      %257 = vsyncadd [#allocation15], 0
      %s259 = sshll.u32 [#allocation14], 4
      %s260 = int_to_ptr.vmem [resolvable:$true] %s259
      %s261 = sshll.u32 %s10, 4
      %s262 = int_to_ptr.hbm [resolvable:$true] %s261
      %264 = dma.vmem_to_hbm [thread:$0]  %s260, 16, %s262, [#allocation15]
    $region69: #{tpu_custom_call.1} parent=1 // pred_fallthru
      _
    // Predicated region
    $region70: #{tpu_custom_call.1} parent=1 // pred_check
      _
    $region71: #{tpu_custom_call.1} parent=1 // pred_check_branch
      %266 = sbr.rel (0) target = $region73
    $region72: #{tpu_custom_call.1} parent=1 // pred_region
      %268 = vsyncadd [#allocation15], 0
      %s270 = sshll.u32 [#allocation16], 4
      %s271 = int_to_ptr.vmem [resolvable:$true] %s270
      %s272 = sshll.u32 %s11, 4
      %s273 = int_to_ptr.hbm [resolvable:$true] %s272
      %275 = dma.vmem_to_hbm [thread:$0]  %s271, 16, %s273, [#allocation15]
    $region73: #{tpu_custom_call.1} parent=1 // pred_fallthru
      _
    // Predicated region
    $region74: #{tpu_custom_call.1} parent=1 // pred_check
      _
    $region75: #{tpu_custom_call.1} parent=1 // pred_check_branch
      %277 = sbr.rel (0) target = $region77
    $region76: #{tpu_custom_call.1} parent=1 // pred_region
      %279 = vsyncadd [#allocation18], 0
      %s281 = sshll.u32 [#allocation17], 4
      %s282 = int_to_ptr.vmem [resolvable:$true] %s281
      %s283 = sshll.u32 %s12, 4
      %s284 = int_to_ptr.hbm [resolvable:$true] %s283
      %286 = dma.vmem_to_hbm [thread:$0]  %s282, 16, %s284, [#allocation18]
    $region77: #{tpu_custom_call.1} parent=1 // pred_fallthru
      _
    // Predicated region
    $region78: #{tpu_custom_call.1} parent=1 // pred_check
      _
    $region79: #{tpu_custom_call.1} parent=1 // pred_check_branch
      %288 = sbr.rel (0) target = $region81
    $region80: #{tpu_custom_call.1} parent=1 // pred_region
      %290 = dma.done [#allocation4], 16
    $region81: #{tpu_custom_call.1} parent=1 // pred_fallthru
      _
    // Predicated region
    $region82: #{tpu_custom_call.1} parent=1 // pred_check
      _
    $region83: #{tpu_custom_call.1} parent=1 // pred_check_branch
      %292 = sbr.rel (0) target = $region85
    $region84: #{tpu_custom_call.1} parent=1 // pred_region
      %294 = dma.done [#allocation15], 16
    $region85: #{tpu_custom_call.1} parent=1 // pred_fallthru
      _
    // Predicated region
    $region86: #{tpu_custom_call.1} parent=1 // pred_check
      _
    $region87: #{tpu_custom_call.1} parent=1 // pred_check_branch
      %296 = sbr.rel (0) target = $region89
    $region88: #{tpu_custom_call.1} parent=1 // pred_region
      %298 = dma.done [#allocation15], 16
    $region89: #{tpu_custom_call.1} parent=1 // pred_fallthru
      _
    // Predicated region
    $region90: #{tpu_custom_call.1} parent=1 // pred_check
      _
    $region91: #{tpu_custom_call.1} parent=1 // pred_check_branch
      %300 = sbr.rel (0) target = $region93
    $region92: #{tpu_custom_call.1} parent=1 // pred_region
      %302 = dma.done [#allocation18], 16
    $region93: #{tpu_custom_call.1} parent=1 // pred_fallthru
      _
    %303 = vsyncpa [#allocation3], 1
    %304 = vsyncpa [#allocation6], 1
    %305 = vsyncpa [#allocation9], 1
    %306 = vsyncpa [#allocation12], 1
    %307 = vsyncpa [#allocation4], 1
    %308 = vsyncpa [#allocation15], 1
    %309 = vsyncpa [#allocation18], 1

</llo_original>
